<compile_context>
chip_gen: v5e
topology: v5e:2x2
jax: 0.10.0
libtpu: 0.0.40
codegen_flags: <defaults>
</compile_context>

<pallas_src>
import functools

import numpy as np

import jax
import jax.numpy as jnp
from jax.experimental import pallas as pl
from jax.experimental.pallas import tpu as pltpu


def _bottleneck_kernel(x_ref, w1_ref, w2_ref, w3_ref, sb_ref, mask_ref, out_ref,
                       *, W, Cin, Cmid, dil, mm_dtype, tap_dtype):
    L = x_ref.shape[-1]                     # lanes = images_per_block * H * W
    x = x_ref[...]                          # (Cin, L) float32 (residual path)

    s1 = sb_ref[0:Cmid, 0:1]
    s2 = sb_ref[0:Cmid, 1:2]
    s3 = sb_ref[0:Cin, 2:3]
    b1 = sb_ref[0:Cmid, 3:4]
    b2 = sb_ref[0:Cmid, 4:5]
    b3 = sb_ref[0:Cin, 5:6]

    # ---- cbr_1: 1x1 conv + BN (f32 scale/shift after the matmul) + ReLU ----
    h1 = jnp.dot(w1_ref[...], x.astype(mm_dtype),
                 preferred_element_type=jnp.float32)            # (Cmid, L)
    h1 = jnp.maximum(h1 * s1 + b1, 0.0)
    h1t = h1.astype(tap_dtype)

    # ---- cbr_2: 3x3 dilated conv fused into ONE K=9*Cmid MXU contraction ----
    # 9 shifted copies of h1 via lane rolls (XLU) + one multiply each by the
    # precomputed border mask.  Valid taps never cross image boundaries, so a
    # roll over the full batched lane axis is exact once masked.
    taps = []
    for ky in range(3):
        dy = (ky - 1) * dil
        for kx in range(3):
            dx = (kx - 1) * dil
            off = dy * W + dx                                   # lane offset
            t = len(taps)
            shifted = pltpu.roll(h1t, shift=(-off) % L, axis=1) if off else h1t
            taps.append(shifted * mask_ref[t:t + 1, :])
    stacked = jnp.concatenate(taps, axis=0)                     # (9*Cmid, L)
    h2 = jnp.dot(w2_ref[...], stacked.astype(mm_dtype),
                 preferred_element_type=jnp.float32)            # (Cmid, L)
    h2 = jnp.maximum(h2 * s2 + b2, 0.0)

    # ---- cb_3: 1x1 conv + BN, then residual add + ReLU ----
    h3 = jnp.dot(w3_ref[...], h2.astype(mm_dtype),
                 preferred_element_type=jnp.float32)            # (Cin, L)
    out_ref[...] = jnp.maximum(h3 * s3 + b3 + x, 0.0).astype(out_ref.dtype)


def _make_tap_masks(H, W, images_per_block, dil, dtype):
    """Border-validity masks for the 9 taps, precomputed on host (trace time)."""
    HW = H * W
    pos = np.arange(HW)
    row = pos // W
    col = pos % W
    masks = np.zeros((9, HW), np.float32)
    t = 0
    for ky in range(3):
        dy = (ky - 1) * dil
        for kx in range(3):
            dx = (kx - 1) * dil
            valid = ((row + dy >= 0) & (row + dy < H) &
                     (col + dx >= 0) & (col + dx < W))
            masks[t] = valid.astype(np.float32)
            t += 1
    masks = np.tile(masks, (1, images_per_block))    # (9, NB*HW), per-image mask
    return jnp.asarray(masks, dtype=dtype)


def _prepare_params(params, Cin, Cmid, mm_dtype):
    """Orient/cast conv weights for the (C, lanes) layout; pack BN scale+shift."""
    w1_k = params["w1"].T.astype(mm_dtype)                       # (Cmid, Cin)
    w2 = params["w2"].reshape(9, Cmid, Cmid)                     # (tap, in, out)
    w2_k = (jnp.transpose(w2, (2, 0, 1))
            .reshape(Cmid, 9 * Cmid).astype(mm_dtype))           # (Cmid, 9*Cmid)
    w3_k = params["w3"].T.astype(mm_dtype)                       # (Cin, Cmid)

    cmax = max(Cin, Cmid)
    sb = jnp.zeros((cmax, 6), jnp.float32)
    sb = sb.at[:Cmid, 0].set(params["s1"][0])
    sb = sb.at[:Cmid, 1].set(params["s2"][0])
    sb = sb.at[:Cin, 2].set(params["s3"][0])
    sb = sb.at[:Cmid, 3].set(params["b1"][0])
    sb = sb.at[:Cmid, 4].set(params["b2"][0])
    sb = sb.at[:Cin, 5].set(params["b3"][0])
    return w1_k, w2_k, w3_k, sb


def bottleneck_identify_psp(x_nchw, params, *, dilation,
                            matmul_dtype=jnp.bfloat16,
                            tap_dtype=None,
                            batch_blocks=None):
    """Forward pass of bottleNeckIdentifyPSP (eval-mode BN).

    x_nchw: (N, Cin, H, W) float32.
    matmul_dtype: MXU operand dtype (bf16 is native on v5e/v6e/v7x; pass
        jnp.float32 for a tight reference match).  Accumulation, BN scale/
        shift, masks and the residual always stay in f32.
    tap_dtype: dtype used for the roll/mask tap construction; default = the
        matmul dtype.  On v5e (no bf16 VPU/XLU) pass jnp.float32.
    batch_blocks: number of grid steps over the batch (>=2 keeps both v7x
        TensorCores busy); defaults to 2 when the batch is even.
    """
    N, Cin, H, W = x_nchw.shape
    Cmid = params["w1"].shape[1]
    HW = H * W
    if tap_dtype is None:
        tap_dtype = matmul_dtype
    if batch_blocks is None:
        batch_blocks = 2 if (N >= 2 and N % 2 == 0) else 1
    assert N % batch_blocks == 0
    NB = N // batch_blocks                       # images per grid step
    L = NB * HW                                  # lanes per grid step
    # Layout requirements of this lane-dense tiling.
    assert L % 128 == 0 and Cin % 8 == 0 and Cmid % 8 == 0

    w1_k, w2_k, w3_k, sb = _prepare_params(params, Cin, Cmid, matmul_dtype)
    masks = _make_tap_masks(H, W, NB, dilation, tap_dtype)

    # (N, Cin, H, W) -> (Cin, N*HW): fold the batch into the lane axis so every
    # matmul sees NB*HW lanes per step.  One tiny XLA transpose each way.
    x_cl = jnp.transpose(x_nchw.reshape(N, Cin, HW), (1, 0, 2)).reshape(Cin, N * HW)

    kernel = functools.partial(_bottleneck_kernel, W=W, Cin=Cin, Cmid=Cmid,
                               dil=dilation, mm_dtype=matmul_dtype,
                               tap_dtype=tap_dtype)

    # NOTE: for production H*W, tile grid=(batch_blocks, H//TH) with a
    # dilation-row halo; choose TH so the x block, the (9*Cmid, TH*W) stacked
    # tensor and the output block, double-buffered, stay well under ~32 MiB on
    # v7x (64 MiB physical VMEM/TC) and ~64 MiB on v5e/v6e.  At 16x16 images a
    # whole batch block per step fits trivially.
    grid_spec = pltpu.PrefetchScalarGridSpec(
        num_scalar_prefetch=0,
        grid=(batch_blocks,),
        in_specs=[
            pl.BlockSpec((Cin, L), lambda b: (0, b)),            # x (f32)
            pl.BlockSpec((Cmid, Cin), lambda b: (0, 0)),         # w1 (mm_dtype)
            pl.BlockSpec((Cmid, 9 * Cmid), lambda b: (0, 0)),    # w2 (mm_dtype)
            pl.BlockSpec((Cin, Cmid), lambda b: (0, 0)),         # w3 (mm_dtype)
            pl.BlockSpec((max(Cin, Cmid), 6), lambda b: (0, 0)), # BN scale/shift
            pl.BlockSpec((9, L), lambda b: (0, 0)),              # border masks
        ],
        out_specs=pl.BlockSpec((Cin, L), lambda b: (0, b)),
    )

    out_cl = pl.pallas_call(
        kernel,
        out_shape=jax.ShapeDtypeStruct((Cin, N * HW), jnp.float32),
        grid_spec=grid_spec,
        compiler_params=pltpu.CompilerParams(
            dimension_semantics=("parallel",)),
    )(x_cl, w1_k, w2_k, w3_k, sb, masks)

    return jnp.transpose(out_cl.reshape(Cin, N, HW), (1, 0, 2)).reshape(N, Cin, H, W)


# ----------------------------------------------------------------------------
# Parameter construction (deterministic) and pure-JAX reference.
# ----------------------------------------------------------------------------
def make_params(key, in_channels, mid_channels):
    ks = jax.random.split(key, 12)
    eps = 1e-5

    def folded_bn(kg, kb, km, kv, c):
        gamma = 1.0 + 0.1 * jax.random.normal(kg, (c,), jnp.float32)
        beta = 0.1 * jax.random.normal(kb, (c,), jnp.float32)
        rmean = 0.1 * jax.random.normal(km, (c,), jnp.float32)
        rvar = 1.0 + 0.1 * jax.random.uniform(kv, (c,), jnp.float32)
        scale = gamma / jnp.sqrt(rvar + eps)
        shift = beta - rmean * scale
        return scale.reshape(1, c), shift.reshape(1, c)

    w1 = 0.2 * jax.random.normal(ks[0], (in_channels, mid_channels), jnp.float32)
    w2 = 0.2 * jax.random.normal(ks[1], (3, 3, mid_channels, mid_channels), jnp.float32)
    w3 = 0.2 * jax.random.normal(ks[2], (mid_channels, in_channels), jnp.float32)

    s1, b1 = folded_bn(ks[3], ks[4], ks[5], ks[6], mid_channels)
    s2, b2 = folded_bn(ks[7], ks[8], ks[9], ks[10], mid_channels)
    s3, b3 = folded_bn(ks[11], ks[3], ks[7], ks[0], in_channels)

    return {
        "w1": w1, "w2": w2, "w3": w3,
        "s1": s1, "b1": b1, "s2": s2, "b2": b2, "s3": s3, "b3": b3,
    }


def reference_forward(x_nchw, params, *, dilation):
    x = jnp.transpose(x_nchw, (0, 2, 3, 1))               # NHWC
    dn = ("NHWC", "HWIO", "NHWC")

    h = jax.lax.conv_general_dilated(x, params["w1"][None, None], (1, 1),
                                     "VALID", dimension_numbers=dn)
    h = jnp.maximum(h * params["s1"][0] + params["b1"][0], 0.0)

    h = jax.lax.conv_general_dilated(h, params["w2"], (1, 1),
                                     [(dilation, dilation), (dilation, dilation)],
                                     rhs_dilation=(dilation, dilation),
                                     dimension_numbers=dn)
    h = jnp.maximum(h * params["s2"][0] + params["b2"][0], 0.0)

    h = jax.lax.conv_general_dilated(h, params["w3"][None, None], (1, 1),
                                     "VALID", dimension_numbers=dn)
    h = h * params["s3"][0] + params["b3"][0]

    y = jnp.maximum(h + x, 0.0)
    return jnp.transpose(y, (0, 3, 1, 2))


if __name__ == "__main__":
    N, IN_C, MID_C, H, W = 4, 16, 8, 16, 16
    DILATION = 2

    key = jax.random.PRNGKey(0)
    kx, kp = jax.random.split(key)
    x = jax.random.normal(kx, (N, IN_C, H, W), jnp.float32)
    params = make_params(kp, IN_C, MID_C)

    ref = jax.block_until_ready(reference_forward(x, params, dilation=DILATION))

    # f32 matmul path: tight check against the XLA conv reference.
    out_f32 = jax.block_until_ready(
        bottleneck_identify_psp(x, params, dilation=DILATION,
                                matmul_dtype=jnp.float32))
    assert out_f32.shape == (N, IN_C, H, W)
    assert jnp.allclose(out_f32, ref, rtol=1e-4, atol=1e-4), (
        float(jnp.max(jnp.abs(out_f32 - ref))))

    # Default path: bf16 MXU operands + bf16 tap construction, f32 accumulation
    # and f32 post-matmul BN scale/shift (so bf16 rounding stays small).
    out_bf16 = jax.block_until_ready(
        bottleneck_identify_psp(x, params, dilation=DILATION))
    assert jnp.allclose(out_bf16, ref, rtol=5e-2, atol=5e-2), (
        float(jnp.max(jnp.abs(out_bf16 - ref))))

    print("KERNEL_OK")
</pallas_src>

<mosaic_0001>
module attributes {stable_mosaic.version = 11 : i64} {
  func.func @_bottleneck_kernel(%arg0: i32, %arg1: memref<16x512xf32, #tpu.memory_space<vmem>>, %arg2: memref<8x16xf32, #tpu.memory_space<vmem>>, %arg3: memref<8x72xf32, #tpu.memory_space<vmem>>, %arg4: memref<16x8xf32, #tpu.memory_space<vmem>>, %arg5: memref<16x6xf32, #tpu.memory_space<vmem>>, %arg6: memref<9x512xf32, #tpu.memory_space<vmem>>, %arg7: memref<16x512xf32, #tpu.memory_space<vmem>>) attributes {dimension_semantics = [#tpu.dimension_semantics<parallel>], iteration_bounds = array<i64: 2>, scalar_prefetch = 0 : i64, scratch_operands = 0 : i64, tpu.core_type = #tpu.core_type<tc>, window_params = [{transform_indices = @transform_0, window_bounds = array<i64: 16, 512>}, {pipeline_mode = #tpu.pipeline_mode<synchronous>, transform_indices = @transform_1, window_bounds = array<i64: 8, 16>}, {pipeline_mode = #tpu.pipeline_mode<synchronous>, transform_indices = @transform_2, window_bounds = array<i64: 8, 72>}, {pipeline_mode = #tpu.pipeline_mode<synchronous>, transform_indices = @transform_3, window_bounds = array<i64: 16, 8>}, {pipeline_mode = #tpu.pipeline_mode<synchronous>, transform_indices = @transform_4, window_bounds = array<i64: 16, 6>}, {pipeline_mode = #tpu.pipeline_mode<synchronous>, transform_indices = @transform_5, window_bounds = array<i64: 9, 512>}, {transform_indices = @transform_6, window_bounds = array<i64: 16, 512>}]} {
    %c0 = arith.constant 0 : index
    %c0_0 = arith.constant 0 : index
    %0 = vector.load %arg1[%c0, %c0_0] : memref<16x512xf32, #tpu.memory_space<vmem>>, vector<16x512xf32>
    %c0_1 = arith.constant 0 : index
    %c0_2 = arith.constant 0 : index
    %1 = vector.load %arg5[%c0_1, %c0_2] : memref<16x6xf32, #tpu.memory_space<vmem>>, vector<8x1xf32>
    %c0_3 = arith.constant 0 : index
    %c1 = arith.constant 1 : index
    %2 = vector.load %arg5[%c0_3, %c1] : memref<16x6xf32, #tpu.memory_space<vmem>>, vector<8x1xf32>
    %c0_4 = arith.constant 0 : index
    %c2 = arith.constant 2 : index
    %3 = vector.load %arg5[%c0_4, %c2] : memref<16x6xf32, #tpu.memory_space<vmem>>, vector<16x1xf32>
    %c0_5 = arith.constant 0 : index
    %c3 = arith.constant 3 : index
    %4 = vector.load %arg5[%c0_5, %c3] : memref<16x6xf32, #tpu.memory_space<vmem>>, vector<8x1xf32>
    %c0_6 = arith.constant 0 : index
    %c4 = arith.constant 4 : index
    %5 = vector.load %arg5[%c0_6, %c4] : memref<16x6xf32, #tpu.memory_space<vmem>>, vector<8x1xf32>
    %c0_7 = arith.constant 0 : index
    %c5 = arith.constant 5 : index
    %6 = vector.load %arg5[%c0_7, %c5] : memref<16x6xf32, #tpu.memory_space<vmem>>, vector<16x1xf32>
    %c0_8 = arith.constant 0 : index
    %c0_9 = arith.constant 0 : index
    %7 = vector.load %arg2[%c0_8, %c0_9] : memref<8x16xf32, #tpu.memory_space<vmem>>, vector<8x16xf32>
    %cst = arith.constant dense<0.000000e+00> : vector<8x512xf32>
    %8 = tpu.matmul %7, %0, %cst {dimension_numbers = #tpu.dot_dimension_numbers<[1], [0], [0], [1], [0, 0, 1, 1], [], []>} : vector<8x16xf32>, vector<16x512xf32>, vector<8x512xf32> -> vector<8x512xf32>
    %9 = vector.broadcast %1 : vector<8x1xf32> to vector<8x512xf32>
    %10 = arith.mulf %8, %9 : vector<8x512xf32>
    %11 = vector.broadcast %4 : vector<8x1xf32> to vector<8x512xf32>
    %12 = arith.addf %10, %11 : vector<8x512xf32>
    %cst_10 = arith.constant 0.000000e+00 : f32
    %13 = vector.broadcast %cst_10 : f32 to vector<8x512xf32>
    %14 = arith.maximumf %12, %13 : vector<8x512xf32>
    %c34_i32 = arith.constant 34 : i32
    %15 = tpu.dynamic_rotate %14 by %c34_i32 dim 1 : vector<8x512xf32>, i32 -> vector<8x512xf32>
    %c0_11 = arith.constant 0 : index
    %c0_12 = arith.constant 0 : index
    %16 = vector.load %arg6[%c0_11, %c0_12] : memref<9x512xf32, #tpu.memory_space<vmem>>, vector<1x512xf32>
    %17 = vector.broadcast %16 : vector<1x512xf32> to vector<8x512xf32>
    %18 = arith.mulf %15, %17 : vector<8x512xf32>
    %c32_i32 = arith.constant 32 : i32
    %19 = tpu.dynamic_rotate %14 by %c32_i32 dim 1 : vector<8x512xf32>, i32 -> vector<8x512xf32>
    %c1_13 = arith.constant 1 : index
    %c0_14 = arith.constant 0 : index
    %20 = vector.load %arg6[%c1_13, %c0_14] : memref<9x512xf32, #tpu.memory_space<vmem>>, vector<1x512xf32>
    %21 = vector.broadcast %20 : vector<1x512xf32> to vector<8x512xf32>
    %22 = arith.mulf %19, %21 : vector<8x512xf32>
    %c30_i32 = arith.constant 30 : i32
    %23 = tpu.dynamic_rotate %14 by %c30_i32 dim 1 : vector<8x512xf32>, i32 -> vector<8x512xf32>
    %c2_15 = arith.constant 2 : index
    %c0_16 = arith.constant 0 : index
    %24 = vector.load %arg6[%c2_15, %c0_16] : memref<9x512xf32, #tpu.memory_space<vmem>>, vector<1x512xf32>
    %25 = vector.broadcast %24 : vector<1x512xf32> to vector<8x512xf32>
    %26 = arith.mulf %23, %25 : vector<8x512xf32>
    %c2_i32 = arith.constant 2 : i32
    %27 = tpu.dynamic_rotate %14 by %c2_i32 dim 1 : vector<8x512xf32>, i32 -> vector<8x512xf32>
    %c3_17 = arith.constant 3 : index
    %c0_18 = arith.constant 0 : index
    %28 = vector.load %arg6[%c3_17, %c0_18] : memref<9x512xf32, #tpu.memory_space<vmem>>, vector<1x512xf32>
    %29 = vector.broadcast %28 : vector<1x512xf32> to vector<8x512xf32>
    %30 = arith.mulf %27, %29 : vector<8x512xf32>
    %c4_19 = arith.constant 4 : index
    %c0_20 = arith.constant 0 : index
    %31 = vector.load %arg6[%c4_19, %c0_20] : memref<9x512xf32, #tpu.memory_space<vmem>>, vector<1x512xf32>
    %32 = vector.broadcast %31 : vector<1x512xf32> to vector<8x512xf32>
    %33 = arith.mulf %14, %32 : vector<8x512xf32>
    %c510_i32 = arith.constant 510 : i32
    %34 = tpu.dynamic_rotate %14 by %c510_i32 dim 1 : vector<8x512xf32>, i32 -> vector<8x512xf32>
    %c5_21 = arith.constant 5 : index
    %c0_22 = arith.constant 0 : index
    %35 = vector.load %arg6[%c5_21, %c0_22] : memref<9x512xf32, #tpu.memory_space<vmem>>, vector<1x512xf32>
    %36 = vector.broadcast %35 : vector<1x512xf32> to vector<8x512xf32>
    %37 = arith.mulf %34, %36 : vector<8x512xf32>
    %c482_i32 = arith.constant 482 : i32
    %38 = tpu.dynamic_rotate %14 by %c482_i32 dim 1 : vector<8x512xf32>, i32 -> vector<8x512xf32>
    %c6 = arith.constant 6 : index
    %c0_23 = arith.constant 0 : index
    %39 = vector.load %arg6[%c6, %c0_23] : memref<9x512xf32, #tpu.memory_space<vmem>>, vector<1x512xf32>
    %40 = vector.broadcast %39 : vector<1x512xf32> to vector<8x512xf32>
    %41 = arith.mulf %38, %40 : vector<8x512xf32>
    %c480_i32 = arith.constant 480 : i32
    %42 = tpu.dynamic_rotate %14 by %c480_i32 dim 1 : vector<8x512xf32>, i32 -> vector<8x512xf32>
    %c7 = arith.constant 7 : index
    %c0_24 = arith.constant 0 : index
    %43 = vector.load %arg6[%c7, %c0_24] : memref<9x512xf32, #tpu.memory_space<vmem>>, vector<1x512xf32>
    %44 = vector.broadcast %43 : vector<1x512xf32> to vector<8x512xf32>
    %45 = arith.mulf %42, %44 : vector<8x512xf32>
    %c478_i32 = arith.constant 478 : i32
    %46 = tpu.dynamic_rotate %14 by %c478_i32 dim 1 : vector<8x512xf32>, i32 -> vector<8x512xf32>
    %c8 = arith.constant 8 : index
    %c0_25 = arith.constant 0 : index
    %47 = vector.load %arg6[%c8, %c0_25] : memref<9x512xf32, #tpu.memory_space<vmem>>, vector<1x512xf32>
    %48 = vector.broadcast %47 : vector<1x512xf32> to vector<8x512xf32>
    %49 = arith.mulf %46, %48 : vector<8x512xf32>
    %50 = tpu.concatenate %18, %22, %26, %30, %33, %37, %41, %45, %49 in 0 : vector<8x512xf32>, vector<8x512xf32>, vector<8x512xf32>, vector<8x512xf32>, vector<8x512xf32>, vector<8x512xf32>, vector<8x512xf32>, vector<8x512xf32>, vector<8x512xf32> -> vector<72x512xf32>
    %c0_26 = arith.constant 0 : index
    %c0_27 = arith.constant 0 : index
    %51 = vector.load %arg3[%c0_26, %c0_27] : memref<8x72xf32, #tpu.memory_space<vmem>>, vector<8x72xf32>
    %cst_28 = arith.constant dense<0.000000e+00> : vector<8x512xf32>
    %52 = tpu.matmul %51, %50, %cst_28 {dimension_numbers = #tpu.dot_dimension_numbers<[1], [0], [0], [1], [0, 0, 1, 1], [], []>} : vector<8x72xf32>, vector<72x512xf32>, vector<8x512xf32> -> vector<8x512xf32>
    %53 = vector.broadcast %2 : vector<8x1xf32> to vector<8x512xf32>
    %54 = arith.mulf %52, %53 : vector<8x512xf32>
    %55 = vector.broadcast %5 : vector<8x1xf32> to vector<8x512xf32>
    %56 = arith.addf %54, %55 : vector<8x512xf32>
    %cst_29 = arith.constant 0.000000e+00 : f32
    %57 = vector.broadcast %cst_29 : f32 to vector<8x512xf32>
    %58 = arith.maximumf %56, %57 : vector<8x512xf32>
    %c0_30 = arith.constant 0 : index
    %c0_31 = arith.constant 0 : index
    %59 = vector.load %arg4[%c0_30, %c0_31] : memref<16x8xf32, #tpu.memory_space<vmem>>, vector<16x8xf32>
    %cst_32 = arith.constant dense<0.000000e+00> : vector<16x512xf32>
    %60 = tpu.matmul %59, %58, %cst_32 {dimension_numbers = #tpu.dot_dimension_numbers<[1], [0], [0], [1], [0, 0, 1, 1], [], []>} : vector<16x8xf32>, vector<8x512xf32>, vector<16x512xf32> -> vector<16x512xf32>
    %61 = vector.broadcast %3 : vector<16x1xf32> to vector<16x512xf32>
    %62 = arith.mulf %60, %61 : vector<16x512xf32>
    %63 = vector.broadcast %6 : vector<16x1xf32> to vector<16x512xf32>
    %64 = arith.addf %62, %63 : vector<16x512xf32>
    %65 = arith.addf %64, %0 : vector<16x512xf32>
    %cst_33 = arith.constant 0.000000e+00 : f32
    %66 = vector.broadcast %cst_33 : f32 to vector<16x512xf32>
    %67 = arith.maximumf %65, %66 : vector<16x512xf32>
    %c0_34 = arith.constant 0 : index
    %c0_35 = arith.constant 0 : index
    %68 = vector.load %arg7[%c0_34, %c0_35] : memref<16x512xf32, #tpu.memory_space<vmem>>, vector<16x512xf32>
    tpu.vector_store %arg7[%c0_34, %c0_35], %67 {strides = array<i32>} : memref<16x512xf32, #tpu.memory_space<vmem>>, vector<16x512xf32>,
    return
  }
  func.func @transform_0(%arg0: i32) -> (i32, i32) {
    %c0_i32 = arith.constant 0 : i32
    %c0_i32_0 = arith.constant 0 : i32
    return %c0_i32, %arg0 : i32, i32
  }
  func.func @transform_1(%arg0: i32) -> (i32, i32) {
    %c0_i32 = arith.constant 0 : i32
    %c0_i32_0 = arith.constant 0 : i32
    %c0_i32_1 = arith.constant 0 : i32
    return %c0_i32, %c0_i32_0 : i32, i32
  }
  func.func @transform_2(%arg0: i32) -> (i32, i32) {
    %c0_i32 = arith.constant 0 : i32
    %c0_i32_0 = arith.constant 0 : i32
    %c0_i32_1 = arith.constant 0 : i32
    return %c0_i32, %c0_i32_0 : i32, i32
  }
  func.func @transform_3(%arg0: i32) -> (i32, i32) {
    %c0_i32 = arith.constant 0 : i32
    %c0_i32_0 = arith.constant 0 : i32
    %c0_i32_1 = arith.constant 0 : i32
    return %c0_i32, %c0_i32_0 : i32, i32
  }
  func.func @transform_4(%arg0: i32) -> (i32, i32) {
    %c0_i32 = arith.constant 0 : i32
    %c0_i32_0 = arith.constant 0 : i32
    %c0_i32_1 = arith.constant 0 : i32
    return %c0_i32, %c0_i32_0 : i32, i32
  }
  func.func @transform_5(%arg0: i32) -> (i32, i32) {
    %c0_i32 = arith.constant 0 : i32
    %c0_i32_0 = arith.constant 0 : i32
    %c0_i32_1 = arith.constant 0 : i32
    return %c0_i32, %c0_i32_0 : i32, i32
  }
  func.func @transform_6(%arg0: i32) -> (i32, i32) {
    %c0_i32 = arith.constant 0 : i32
    %c0_i32_0 = arith.constant 0 : i32
    return %c0_i32, %arg0 : i32, i32
  }
}

</mosaic_0001>

<llo_original>
// kernel: tpu_custom_call.1
$region0: #{tpu_custom_call.1}
  #allocation0 [shape = 'u32[]', space=smem, size = 0x4, offset = 0x4, fixed_abs, tag = 'smem constant byte address 0x4 - core index']
  #allocation1 [shape = 'u32[72,128]{1,0:T(1,128)}', space=vmem, size = 0x9000, scoped, tag = 'internal scratch']
  %s0 = inlined_call_operand.hbm [shape: f32[16,1024], index: 0, kind: input, shape index: {}]
  %s1 = inlined_call_operand.vmem [shape: f32[8,16], index: 1, kind: input, shape index: {}]
  %s2 = inlined_call_operand.vmem [shape: f32[8,72], index: 2, kind: input, shape index: {}]
  %s3 = inlined_call_operand.vmem [shape: f32[16,8], index: 3, kind: input, shape index: {}]
  %s4 = inlined_call_operand.vmem [shape: f32[16,6], index: 4, kind: input, shape index: {}]
  %s5 = inlined_call_operand.hbm [shape: f32[9,512], index: 5, kind: input, shape index: {}]
  %s6 = inlined_call_operand.hbm [shape: f32[16,1024], index: 6, kind: output, shape index: {}]
  %s7 = sld [smem:[#allocation0]]
  $region65: #{tpu_custom_call.1} parent=0
    _
  %s9 = ssub.s32 1, %s7
  %s10 = scalar_select 0, %s9, %s7
  $region1: #{tpu_custom_call.1} parent=0
    #allocation2 [shape = 'u8[65536]{0}', space=vmem, size = 0x10000, scoped, tag = 'input window, operand 0']
    #allocation3 [shape = 's32[2]{0}', space=sflag, size = 0x8, scoped, tag = 'scoped memory for tpu_custom_call.1']
    #allocation4 [shape = 's32[2]{0}', space=sflag, size = 0x8, scoped, tag = 'scoped memory for tpu_custom_call.1']
    #allocation5 [shape = 'u8[32768]{0}', space=vmem, size = 0x8000, scoped, tag = 'input window, operand 5, single buffered']
    #allocation6 [shape = 's32[1]{0}', space=sflag, size = 0x4, scoped, tag = 'scoped memory for tpu_custom_call.1']
    #allocation7 [shape = 'u8[65536]{0}', space=vmem, size = 0x10000, scoped, tag = 'output window, operand 0']
    %11 = vsyncpa [#allocation3], 0
    %s12 = scalar_lea.sflag [#allocation3], 1
    %13 = vsyncpa %s12, 0
    %14 = vsyncpa [#allocation6], 0
    %15 = vsyncpa [#allocation4], 0
    %s16 = scalar_lea.sflag [#allocation4], 1
    %17 = vsyncpa %s16, 0
    loop: start=0, step=1, limit=4
    $region2: #{tpu_custom_call.1} parent=1 // loop_pre_header
      _
    $region3: #{tpu_custom_call.1} parent=1 // loop_header
      %s19 = sphi 0, %s23
      %p20 = scmp.ge.s32.totalorder %s19, 4
      %s29 = sphi 0, %s31
      %s32 = sphi 0, %s29
      %s33 = sphi 0, %s32
      %s49 = sphi 0, %s33
      %s53 = sphi 0, %s53
      %s55 = sphi 0, %s53
      %s56 = sphi 0, %s55
      %s70 = sphi 0, %s56
      %s74 = sphi 0, %s74
      %s76 = sphi 0, %s74
      %s77 = sphi 0, %s76
      %s91 = sphi 0, %s77
      %s95 = sphi 0, %s95
      %s97 = sphi 0, %s95
      %s98 = sphi 0, %s97
      %s112 = sphi 0, %s98
      %s116 = sphi 0, %s116
      %s118 = sphi 0, %s116
      %s119 = sphi 0, %s118
      %s133 = sphi 0, %s119
      %s137 = sphi 0, %s137
      %s139 = sphi 0, %s137
      %s140 = sphi 0, %s139
      %s154 = sphi 0, %s140
      %s160 = sphi 0, %s162
      %s163 = sphi 0, %s160
      %s164 = sphi 0, %s163
      %s180 = sphi 0, %s164
    $region4: #{tpu_custom_call.1} parent=1 // loop_header_branch
      %22 = sbr.rel (%p20) target = $region8
    $region5: #{tpu_custom_call.1} parent=1 // loop_body
      %s24 = ssub.s32 %s19, 1
      %s25 = ssub.s32 %s19, 2
      %s26 = sadd.s32 %s19, 1
      %s27 = ssub.s32 %s19, %s26
      %p28 = scmp.eq.s32.totalorder %s27, 0
      %s30 = sadd.s32 %s29, 1
      %s31 = scalar_select %p28, %s29, %s30
      %p34 = pneg %p28
      %p35 = scmp.eq.s32.totalorder %s19, 1
      %p36 = por %p34, %p35
      %p37 = scmp.ne.s32.totalorder %s29, %s32
      %p38 = scmp.eq.s32.totalorder %s19, 0
      %p39 = por %p37, %p38
      %p40 = scmp.ne.s32.totalorder %s29, %s32
      %p41 = scmp.eq.s32.totalorder %s24, 1
      %p42 = por %p40, %p41
      %p43 = scmp.ne.s32.totalorder %s32, %s33
      %p44 = scmp.eq.s32.totalorder %s24, 0
      %p45 = por %p43, %p44
      %p46 = scmp.ne.s32.totalorder %s32, %s33
      %p47 = scmp.eq.s32.totalorder %s25, 1
      %p48 = por %p46, %p47
      %p50 = scmp.ne.s32.totalorder %s33, %s49
      %p51 = scmp.eq.s32.totalorder %s25, 0
      %p52 = por %p50, %p51
      %s54 = sadd.s32 %s53, 1
      %p57 = scmp.eq.s32.totalorder %s19, 1
      %p58 = scmp.ne.s32.totalorder %s53, %s55
      %p59 = scmp.eq.s32.totalorder %s19, 0
      %p60 = por %p58, %p59
      %p61 = scmp.ne.s32.totalorder %s53, %s55
      %p62 = scmp.eq.s32.totalorder %s24, 1
      %p63 = por %p61, %p62
      %p64 = scmp.ne.s32.totalorder %s55, %s56
      %p65 = scmp.eq.s32.totalorder %s24, 0
      %p66 = por %p64, %p65
      %p67 = scmp.ne.s32.totalorder %s55, %s56
      %p68 = scmp.eq.s32.totalorder %s25, 1
      %p69 = por %p67, %p68
      %p71 = scmp.ne.s32.totalorder %s56, %s70
      %p72 = scmp.eq.s32.totalorder %s25, 0
      %p73 = por %p71, %p72
      %s75 = sadd.s32 %s74, 1
      %p78 = scmp.eq.s32.totalorder %s19, 1
      %p79 = scmp.ne.s32.totalorder %s74, %s76
      %p80 = scmp.eq.s32.totalorder %s19, 0
      %p81 = por %p79, %p80
      %p82 = scmp.ne.s32.totalorder %s74, %s76
      %p83 = scmp.eq.s32.totalorder %s24, 1
      %p84 = por %p82, %p83
      %p85 = scmp.ne.s32.totalorder %s76, %s77
      %p86 = scmp.eq.s32.totalorder %s24, 0
      %p87 = por %p85, %p86
      %p88 = scmp.ne.s32.totalorder %s76, %s77
      %p89 = scmp.eq.s32.totalorder %s25, 1
      %p90 = por %p88, %p89
      %p92 = scmp.ne.s32.totalorder %s77, %s91
      %p93 = scmp.eq.s32.totalorder %s25, 0
      %p94 = por %p92, %p93
      %s96 = sadd.s32 %s95, 1
      %p99 = scmp.eq.s32.totalorder %s19, 1
      %p100 = scmp.ne.s32.totalorder %s95, %s97
      %p101 = scmp.eq.s32.totalorder %s19, 0
      %p102 = por %p100, %p101
      %p103 = scmp.ne.s32.totalorder %s95, %s97
      %p104 = scmp.eq.s32.totalorder %s24, 1
      %p105 = por %p103, %p104
      %p106 = scmp.ne.s32.totalorder %s97, %s98
      %p107 = scmp.eq.s32.totalorder %s24, 0
      %p108 = por %p106, %p107
      %p109 = scmp.ne.s32.totalorder %s97, %s98
      %p110 = scmp.eq.s32.totalorder %s25, 1
      %p111 = por %p109, %p110
      %p113 = scmp.ne.s32.totalorder %s98, %s112
      %p114 = scmp.eq.s32.totalorder %s25, 0
      %p115 = por %p113, %p114
      %s117 = sadd.s32 %s116, 1
      %p120 = scmp.eq.s32.totalorder %s19, 1
      %p121 = scmp.ne.s32.totalorder %s116, %s118
      %p122 = scmp.eq.s32.totalorder %s19, 0
      %p123 = por %p121, %p122
      %p124 = scmp.ne.s32.totalorder %s116, %s118
      %p125 = scmp.eq.s32.totalorder %s24, 1
      %p126 = por %p124, %p125
      %p127 = scmp.ne.s32.totalorder %s118, %s119
      %p128 = scmp.eq.s32.totalorder %s24, 0
      %p129 = por %p127, %p128
      %p130 = scmp.ne.s32.totalorder %s118, %s119
      %p131 = scmp.eq.s32.totalorder %s25, 1
      %p132 = por %p130, %p131
      %p134 = scmp.ne.s32.totalorder %s119, %s133
      %p135 = scmp.eq.s32.totalorder %s25, 0
      %p136 = por %p134, %p135
      %s138 = sadd.s32 %s137, 1
      %p141 = scmp.eq.s32.totalorder %s19, 1
      %p142 = scmp.ne.s32.totalorder %s137, %s139
      %p143 = scmp.eq.s32.totalorder %s19, 0
      %p144 = por %p142, %p143
      %p145 = scmp.ne.s32.totalorder %s137, %s139
      %p146 = scmp.eq.s32.totalorder %s24, 1
      %p147 = por %p145, %p146
      %p148 = scmp.ne.s32.totalorder %s139, %s140
      %p149 = scmp.eq.s32.totalorder %s24, 0
      %p150 = por %p148, %p149
      %p151 = scmp.ne.s32.totalorder %s139, %s140
      %p152 = scmp.eq.s32.totalorder %s25, 1
      %p153 = por %p151, %p152
      %p155 = scmp.ne.s32.totalorder %s140, %s154
      %p156 = scmp.eq.s32.totalorder %s25, 0
      %p157 = por %p155, %p156
      %s158 = ssub.s32 %s19, %s26
      %p159 = scmp.eq.s32.totalorder %s158, 0
      %s161 = sadd.s32 %s160, 1
      %s162 = scalar_select %p159, %s160, %s161
      %p165 = pneg %p159
      %p166 = scmp.eq.s32.totalorder %s19, 1
      %p167 = por %p165, %p166
      %p168 = scmp.ne.s32.totalorder %s160, %s163
      %p169 = scmp.eq.s32.totalorder %s19, 0
      %p170 = por %p168, %p169
      %p171 = scmp.ne.s32.totalorder %s160, %s163
      %p172 = scmp.eq.s32.totalorder %s24, 1
      %p173 = por %p171, %p172
      %p174 = scmp.ne.s32.totalorder %s163, %s164
      %p175 = scmp.eq.s32.totalorder %s24, 0
      %p176 = por %p174, %p175
      %p177 = scmp.ne.s32.totalorder %s163, %s164
      %p178 = scmp.eq.s32.totalorder %s25, 1
      %p179 = por %p177, %p178
      %p181 = scmp.ne.s32.totalorder %s164, %s180
      %p182 = scmp.eq.s32.totalorder %s25, 0
      %p183 = por %p181, %p182
      %p184 = scmp.le.s32.totalorder 1, %s19
      %p185 = scmp.lt.s32.totalorder %s19, 3
      %p186 = pnand %p184, %p185
      %p187 = pneg %p186
      // Predicated region
      $region9: #{tpu_custom_call.1} parent=5 // pred_check
        _
      $region10: #{tpu_custom_call.1} parent=5 // pred_check_branch
        %189 = sbr.rel (%p186) target = $region12
      $region11: #{tpu_custom_call.1} parent=5 // pred_region
        %s190 = ssub.s32 %s19, 1
        // Predicated region
        $region13: #{tpu_custom_call.1} parent=11 // pred_check
          %p191 = pneg %p66
        $region14: #{tpu_custom_call.1} parent=11 // pred_check_branch
          %193 = sbr.rel (%p191) target = $region16
        $region15: #{tpu_custom_call.1} parent=11 // pred_region
          _
        $region16: #{tpu_custom_call.1} parent=11 // pred_fallthru
          _
        // Predicated region
        $region17: #{tpu_custom_call.1} parent=11 // pred_check
          %p194 = pneg %p87
        $region18: #{tpu_custom_call.1} parent=11 // pred_check_branch
          %196 = sbr.rel (%p194) target = $region20
        $region19: #{tpu_custom_call.1} parent=11 // pred_region
          _
        $region20: #{tpu_custom_call.1} parent=11 // pred_fallthru
          _
        // Predicated region
        $region21: #{tpu_custom_call.1} parent=11 // pred_check
          %p197 = pneg %p108
        $region22: #{tpu_custom_call.1} parent=11 // pred_check_branch
          %199 = sbr.rel (%p197) target = $region24
        $region23: #{tpu_custom_call.1} parent=11 // pred_region
          _
        $region24: #{tpu_custom_call.1} parent=11 // pred_fallthru
          _
        // Predicated region
        $region25: #{tpu_custom_call.1} parent=11 // pred_check
          %p200 = pneg %p129
        $region26: #{tpu_custom_call.1} parent=11 // pred_check_branch
          %202 = sbr.rel (%p200) target = $region28
        $region27: #{tpu_custom_call.1} parent=11 // pred_region
          _
        $region28: #{tpu_custom_call.1} parent=11 // pred_fallthru
          _
        // Predicated region
        $region29: #{tpu_custom_call.1} parent=11 // pred_check
          %p203 = pneg %p150
        $region30: #{tpu_custom_call.1} parent=11 // pred_check_branch
          %205 = sbr.rel (%p203) target = $region32
        $region31: #{tpu_custom_call.1} parent=11 // pred_region
          %207 = vsyncadd [#allocation6], 0
          %s208 = sshll.u32 %s5, 4
          %s209 = int_to_ptr.hbm [resolvable:$true] %s208
          %s210 = sshll.u32 [#allocation5], 4
          %s211 = int_to_ptr.vmem [resolvable:$true] %s210
          %216 = dma.hbm_to_vmem [thread:$0]  %s209, 1024, %s211, [#allocation6], 512, 512, 32
        $region32: #{tpu_custom_call.1} parent=11 // pred_fallthru
          _
      $region12: #{tpu_custom_call.1} parent=5 // pred_fallthru
        _
      %p217 = scmp.lt.s32.totalorder %s19, 2
      // Predicated region
      $region33: #{tpu_custom_call.1} parent=5 // pred_check
        %p218 = pneg %p217
      $region34: #{tpu_custom_call.1} parent=5 // pred_check_branch
        %220 = sbr.rel (%p218) target = $region36
      $region35: #{tpu_custom_call.1} parent=5 // pred_region
        // Predicated region
        $region37: #{tpu_custom_call.1} parent=35 // pred_check
          %p221 = pneg %p39
        $region38: #{tpu_custom_call.1} parent=35 // pred_check_branch
          %223 = sbr.rel (%p221) target = $region40
        $region39: #{tpu_custom_call.1} parent=35 // pred_region
          %s224 = sand.u32 %s29, 1
          %s225 = scalar_lea.sflag [#allocation3], %s224
          %s226 = sand.u32 %s29, 1
          %s227 = smul.addr %s226, 64
          %s228 = scalar_lea.vmem [#allocation2], %s227
          %s229 = smul.u32 4, %s19
          %231 = vsyncadd %s225, 0
          %s232 = smul.addr %s229, 8
          %s233 = scalar_lea.hbm %s0, %s232
          %s234 = sshll.u32 %s233, 4
          %s235 = int_to_ptr.hbm [resolvable:$true] %s234
          %s236 = sshll.u32 %s228, 4
          %s237 = int_to_ptr.vmem [resolvable:$true] %s236
          %242 = dma.hbm_to_vmem [thread:$0]  %s235, 1024, %s237, %s225, 1024, 512, 32
        $region40: #{tpu_custom_call.1} parent=35 // pred_fallthru
          _
      $region36: #{tpu_custom_call.1} parent=5 // pred_fallthru
        _
      %p243 = scmp.le.s32.totalorder 1, %s19
      %p244 = scmp.lt.s32.totalorder %s19, 3
      %p245 = pnand %p243, %p244
      %p246 = pneg %p245
      // Predicated region
      $region41: #{tpu_custom_call.1} parent=5 // pred_check
        _
      $region42: #{tpu_custom_call.1} parent=5 // pred_check_branch
        %248 = sbr.rel (%p245) target = $region44
      $region43: #{tpu_custom_call.1} parent=5 // pred_region
        %s249 = ssub.s32 %s19, 1
        %s250 = sand.u32 %s32, 1
        %s251 = scalar_lea.sflag [#allocation3], %s250
        %s252 = sand.u32 %s32, 1
        %s253 = smul.addr %s252, 64
        %s254 = scalar_lea.vmem [#allocation2], %s253
        // Predicated region
        $region45: #{tpu_custom_call.1} parent=43 // pred_check
          %p255 = pneg %p45
        $region46: #{tpu_custom_call.1} parent=43 // pred_check_branch
          %257 = sbr.rel (%p255) target = $region48
        $region47: #{tpu_custom_call.1} parent=43 // pred_region
          %259 = dma.done %s251, 1024
        $region48: #{tpu_custom_call.1} parent=43 // pred_fallthru
          _
        // Predicated region
        $region49: #{tpu_custom_call.1} parent=43 // pred_check
          %p260 = pneg %p150
        $region50: #{tpu_custom_call.1} parent=43 // pred_check_branch
          %262 = sbr.rel (%p260) target = $region52
        $region51: #{tpu_custom_call.1} parent=43 // pred_region
          %264 = dma.done [#allocation6], 1024
        $region52: #{tpu_custom_call.1} parent=43 // pred_fallthru
          _
        %s265 = sand.u32 %s32, 1
        %s266 = scalar_lea.sflag [#allocation3], %s265
        %s267 = sand.u32 %s32, 1
        %s268 = smul.addr %s267, 64
        %s269 = scalar_lea.vmem [#allocation2], %s268
        %p270 = pneg %p45
        %p271 = pneg %p42
        %p272 = pneg %p66
        %p273 = pneg %p63
        %p274 = pneg %p87
        %p275 = pneg %p84
        %p276 = pneg %p108
        %p277 = pneg %p105
        %p278 = pneg %p129
        %p279 = pneg %p126
        %p280 = pneg %p150
        %p281 = pneg %p147
        %p282 = pneg %p176
        %p283 = pneg %p173
        %s284 = sand.u32 %s163, 1
        %s285 = scalar_lea.sflag [#allocation4], %s284
        %s286 = sand.u32 %s163, 1
        %s287 = smul.addr %s286, 64
        %s288 = scalar_lea.vmem [#allocation7], %s287
        %s289 = smul.u32 4, %s24
        %s290 = smul.u32 4, %s24
        %v291 = vld [vmem:[%s254] sm:$0xff]
        %v292 = vld [vmem:[%s254 + $0x8] sm:$0xff]
        %v293 = vld [vmem:[%s254 + $0x10] sm:$0xff]
        %v294 = vld [vmem:[%s254 + $0x18] sm:$0xff]
        %v295 = vld [vmem:[%s254 + $0x20] sm:$0xff]
        %v296 = vld [vmem:[%s254 + $0x28] sm:$0xff]
        %v297 = vld [vmem:[%s254 + $0x30] sm:$0xff]
        %v298 = vld [vmem:[%s254 + $0x38] sm:$0xff]
        %v299 = vld [vmem:[%s4] sm:$0xff]
        %v300 = vld [vmem:[%s4 + $0x8] sm:$0xff]
        %v301 = vld [vmem:[%s1] sm:$0xff]
        %vm302 = vcmask 130048
        %v304 = vsel %vm302, %v301, 0
        %306 = vmatpush.msra.mxu0 0.0
        %307 = vmatpush.msra.mxu0 0.0
        %308 = vmatpush.msra.mxu0 0.0
        %309 = vmatpush.msra.mxu0 0.0
        %310 = vmatpush.msra.mxu0 0.0
        %311 = vmatpush.msra.mxu0 0.0
        %312 = vmatpush.msra.mxu0 0.0
        %313 = vmatpush.msra.mxu0 0.0
        %314 = vmatpush.msra.mxu0 0.0
        %315 = vmatpush.msra.mxu0 0.0
        %316 = vmatpush.msra.mxu0 0.0
        %317 = vmatpush.msra.mxu0 0.0
        %318 = vmatpush.msra.mxu0 0.0
        %319 = vmatpush.msra.mxu0 0.0
        %320 = vmatpush.msra.mxu0 %v295
        %321 = vmatpush.msra.mxu0 %v291
        %322 = vmatmul.f32.gmra.mxu0 %v304
        %v323 = vpop.f32.mrf.mxu0
        %v324 = vadd.f32 0.0, %v323
        %325 = vdwg.mxu0
        %326 = vmatpush.msra.mxu0 0.0
        %327 = vmatpush.msra.mxu0 0.0
        %328 = vmatpush.msra.mxu0 0.0
        %329 = vmatpush.msra.mxu0 0.0
        %330 = vmatpush.msra.mxu0 0.0
        %331 = vmatpush.msra.mxu0 0.0
        %332 = vmatpush.msra.mxu0 0.0
        %333 = vmatpush.msra.mxu0 0.0
        %334 = vmatpush.msra.mxu0 0.0
        %335 = vmatpush.msra.mxu0 0.0
        %336 = vmatpush.msra.mxu0 0.0
        %337 = vmatpush.msra.mxu0 0.0
        %338 = vmatpush.msra.mxu0 0.0
        %339 = vmatpush.msra.mxu0 0.0
        %340 = vmatpush.msra.mxu0 %v296
        %341 = vmatpush.msra.mxu0 %v292
        %342 = vmatmul.f32.gmra.mxu0 %v304
        %v343 = vpop.f32.mrf.mxu0
        %v344 = vadd.f32 0.0, %v343
        %345 = vdwg.mxu0
        %346 = vmatpush.msra.mxu0 0.0
        %347 = vmatpush.msra.mxu0 0.0
        %348 = vmatpush.msra.mxu0 0.0
        %349 = vmatpush.msra.mxu0 0.0
        %350 = vmatpush.msra.mxu0 0.0
        %351 = vmatpush.msra.mxu0 0.0
        %352 = vmatpush.msra.mxu0 0.0
        %353 = vmatpush.msra.mxu0 0.0
        %354 = vmatpush.msra.mxu0 0.0
        %355 = vmatpush.msra.mxu0 0.0
        %356 = vmatpush.msra.mxu0 0.0
        %357 = vmatpush.msra.mxu0 0.0
        %358 = vmatpush.msra.mxu0 0.0
        %359 = vmatpush.msra.mxu0 0.0
        %360 = vmatpush.msra.mxu0 %v297
        %361 = vmatpush.msra.mxu0 %v293
        %362 = vmatmul.f32.gmra.mxu0 %v304
        %v363 = vpop.f32.mrf.mxu0
        %v364 = vadd.f32 0.0, %v363
        %365 = vdwg.mxu0
        %366 = vmatpush.msra.mxu0 0.0
        %367 = vmatpush.msra.mxu0 0.0
        %368 = vmatpush.msra.mxu0 0.0
        %369 = vmatpush.msra.mxu0 0.0
        %370 = vmatpush.msra.mxu0 0.0
        %371 = vmatpush.msra.mxu0 0.0
        %372 = vmatpush.msra.mxu0 0.0
        %373 = vmatpush.msra.mxu0 0.0
        %374 = vmatpush.msra.mxu0 0.0
        %375 = vmatpush.msra.mxu0 0.0
        %376 = vmatpush.msra.mxu0 0.0
        %377 = vmatpush.msra.mxu0 0.0
        %378 = vmatpush.msra.mxu0 0.0
        %379 = vmatpush.msra.mxu0 0.0
        %380 = vmatpush.msra.mxu0 %v298
        %381 = vmatpush.msra.mxu0 %v294
        %382 = vmatmul.f32.gmra.mxu0 %v304
        %v383 = vpop.f32.mrf.mxu0
        %v384 = vadd.f32 0.0, %v383
        %385 = vdwg.mxu0
        %387 = vset.pattern.permute.xlu0 0
        %388 = vperm.xlu0 %387, %v299
        %v389 = vpop.permute.xlu0 %388
        %v391 = vmul.f32 %v324, %v389
        %v392 = vmul.f32 %v344, %v389
        %v393 = vmul.f32 %v364, %v389
        %v394 = vmul.f32 %v384, %v389
        %395 = vset.pattern.permute.xlu0 3
        %396 = vperm.xlu0 %395, %v299
        %v397 = vpop.permute.xlu0 %396
        %v399 = vadd.f32 %v391, %v397
        %v400 = vadd.f32 %v392, %v397
        %v401 = vadd.f32 %v393, %v397
        %v402 = vadd.f32 %v394, %v397
        %v403 = vmax.f32 %v399, 0.0
        %v404 = vmax.f32 %v400, 0.0
        %v405 = vmax.f32 %v401, 0.0
        %v406 = vmax.f32 %v402, 0.0
        %407 = vrot.lane.b32.xlu0 %v403, 34
        %v408 = vpop.permute.xlu0 %407
        %409 = vrot.lane.b32.xlu0 %v404, 34
        %v410 = vpop.permute.xlu0 %409
        %411 = vrot.lane.b32.xlu0 %v405, 34
        %v412 = vpop.permute.xlu0 %411
        %413 = vrot.lane.b32.xlu0 %v406, 34
        %v414 = vpop.permute.xlu0 %413
        %v415 = vlaneseq
        %v416 = vand.u32 %v415, 127
        %vm417 = vcmp.lt.s32.totalorder %v416, 34
        %v418 = vsel %vm417, %v412, %v414
        %v419 = vsel %vm417, %v410, %v412
        %v420 = vsel %vm417, %v408, %v410
        %v421 = vsel %vm417, %v414, %v408
        %v422 = vld [vmem:[#allocation5] ss:$8 sm:$0xf]
        %v424 = vperm.slane %v422, 0
        %v425 = vperm.slane %v422, 1
        %v426 = vperm.slane %v422, 2
        %v427 = vperm.slane %v422, 3
        %v432 = vmul.f32 %v421, %v424
        %v433 = vmul.f32 %v420, %v425
        %v434 = vmul.f32 %v419, %v426
        %v435 = vmul.f32 %v418, %v427
        %436 = vrot.lane.b32.xlu0 %v403, 32
        %v437 = vpop.permute.xlu0 %436
        %438 = vrot.lane.b32.xlu0 %v404, 32
        %v439 = vpop.permute.xlu0 %438
        %440 = vrot.lane.b32.xlu0 %v405, 32
        %v441 = vpop.permute.xlu0 %440
        %442 = vrot.lane.b32.xlu0 %v406, 32
        %v443 = vpop.permute.xlu0 %442
        %vm444 = vcmp.lt.s32.totalorder %v416, 32
        %v445 = vsel %vm444, %v441, %v443
        %v446 = vsel %vm444, %v439, %v441
        %v447 = vsel %vm444, %v437, %v439
        %v448 = vsel %vm444, %v443, %v437
        %s449 = scalar_lea.vmem [#allocation5], 1
        %v450 = vld [vmem:[%s449] ss:$8 sm:$0xf]
        %v452 = vperm.slane %v450, 0
        %v453 = vperm.slane %v450, 1
        %v454 = vperm.slane %v450, 2
        %v455 = vperm.slane %v450, 3
        %v460 = vmul.f32 %v448, %v452
        %v461 = vmul.f32 %v447, %v453
        %v462 = vmul.f32 %v446, %v454
        %v463 = vmul.f32 %v445, %v455
        %464 = vrot.lane.b32.xlu0 %v403, 30
        %v465 = vpop.permute.xlu0 %464
        %466 = vrot.lane.b32.xlu0 %v404, 30
        %v467 = vpop.permute.xlu0 %466
        %468 = vrot.lane.b32.xlu0 %v405, 30
        %v469 = vpop.permute.xlu0 %468
        %470 = vrot.lane.b32.xlu0 %v406, 30
        %v471 = vpop.permute.xlu0 %470
        %vm472 = vcmp.lt.s32.totalorder %v416, 30
        %v473 = vsel %vm472, %v469, %v471
        %v474 = vsel %vm472, %v467, %v469
        %v475 = vsel %vm472, %v465, %v467
        %v476 = vsel %vm472, %v471, %v465
        %s477 = scalar_lea.vmem [#allocation5], 2
        %v478 = vld [vmem:[%s477] ss:$8 sm:$0xf]
        %v480 = vperm.slane %v478, 0
        %v481 = vperm.slane %v478, 1
        %v482 = vperm.slane %v478, 2
        %v483 = vperm.slane %v478, 3
        %v488 = vmul.f32 %v476, %v480
        %v489 = vmul.f32 %v475, %v481
        %v490 = vmul.f32 %v474, %v482
        %v491 = vmul.f32 %v473, %v483
        %492 = vrot.lane.b32.xlu0 %v403, 2
        %v493 = vpop.permute.xlu0 %492
        %494 = vrot.lane.b32.xlu0 %v404, 2
        %v495 = vpop.permute.xlu0 %494
        %496 = vrot.lane.b32.xlu0 %v405, 2
        %v497 = vpop.permute.xlu0 %496
        %498 = vrot.lane.b32.xlu0 %v406, 2
        %v499 = vpop.permute.xlu0 %498
        %vm500 = vcmp.lt.s32.totalorder %v416, 2
        %v501 = vsel %vm500, %v497, %v499
        %v502 = vsel %vm500, %v495, %v497
        %v503 = vsel %vm500, %v493, %v495
        %v504 = vsel %vm500, %v499, %v493
        %s505 = scalar_lea.vmem [#allocation5], 3
        %v506 = vld [vmem:[%s505] ss:$8 sm:$0xf]
        %v508 = vperm.slane %v506, 0
        %v509 = vperm.slane %v506, 1
        %v510 = vperm.slane %v506, 2
        %v511 = vperm.slane %v506, 3
        %v516 = vmul.f32 %v504, %v508
        %v517 = vmul.f32 %v503, %v509
        %v518 = vmul.f32 %v502, %v510
        %v519 = vmul.f32 %v501, %v511
        %s520 = scalar_lea.vmem [#allocation5], 4
        %v521 = vld [vmem:[%s520] ss:$8 sm:$0xf]
        %v523 = vperm.slane %v521, 0
        %v524 = vperm.slane %v521, 1
        %v525 = vperm.slane %v521, 2
        %v526 = vperm.slane %v521, 3
        %v531 = vmul.f32 %v403, %v523
        %v532 = vmul.f32 %v404, %v524
        %v533 = vmul.f32 %v405, %v525
        %v534 = vmul.f32 %v406, %v526
        %535 = vrot.lane.b32.xlu0 %v403, 126
        %v536 = vpop.permute.xlu0 %535
        %537 = vrot.lane.b32.xlu0 %v404, 126
        %v538 = vpop.permute.xlu0 %537
        %539 = vrot.lane.b32.xlu0 %v405, 126
        %v540 = vpop.permute.xlu0 %539
        %541 = vrot.lane.b32.xlu0 %v406, 126
        %v542 = vpop.permute.xlu0 %541
        %vm543 = vcmp.lt.s32.totalorder %v416, 126
        %v544 = vsel %vm543, %v540, %v542
        %v545 = vsel %vm543, %v538, %v540
        %v546 = vsel %vm543, %v536, %v538
        %v547 = vsel %vm543, %v542, %v536
        %s548 = scalar_lea.vmem [#allocation5], 5
        %v549 = vld [vmem:[%s548] ss:$8 sm:$0xf]
        %v551 = vperm.slane %v549, 0
        %v552 = vperm.slane %v549, 1
        %v553 = vperm.slane %v549, 2
        %v554 = vperm.slane %v549, 3
        %v559 = vmul.f32 %v546, %v551
        %v560 = vmul.f32 %v545, %v552
        %v561 = vmul.f32 %v544, %v553
        %v562 = vmul.f32 %v547, %v554
        %563 = vrot.lane.b32.xlu0 %v403, 98
        %v564 = vpop.permute.xlu0 %563
        %565 = vrot.lane.b32.xlu0 %v404, 98
        %v566 = vpop.permute.xlu0 %565
        %567 = vrot.lane.b32.xlu0 %v405, 98
        %v568 = vpop.permute.xlu0 %567
        %569 = vrot.lane.b32.xlu0 %v406, 98
        %v570 = vpop.permute.xlu0 %569
        %vm571 = vcmp.lt.s32.totalorder %v416, 98
        %v572 = vsel %vm571, %v568, %v570
        %v573 = vsel %vm571, %v566, %v568
        %v574 = vsel %vm571, %v564, %v566
        %v575 = vsel %vm571, %v570, %v564
        %s576 = scalar_lea.vmem [#allocation5], 6
        %v577 = vld [vmem:[%s576] ss:$8 sm:$0xf]
        %v579 = vperm.slane %v577, 0
        %v580 = vperm.slane %v577, 1
        %v581 = vperm.slane %v577, 2
        %v582 = vperm.slane %v577, 3
        %v587 = vmul.f32 %v574, %v579
        %v588 = vmul.f32 %v573, %v580
        %v589 = vmul.f32 %v572, %v581
        %v590 = vmul.f32 %v575, %v582
        %591 = vrot.lane.b32.xlu0 %v403, 96
        %v592 = vpop.permute.xlu0 %591
        %593 = vrot.lane.b32.xlu0 %v404, 96
        %v594 = vpop.permute.xlu0 %593
        %595 = vrot.lane.b32.xlu0 %v405, 96
        %v596 = vpop.permute.xlu0 %595
        %597 = vrot.lane.b32.xlu0 %v406, 96
        %v598 = vpop.permute.xlu0 %597
        %vm599 = vcmp.lt.s32.totalorder %v416, 96
        %v600 = vsel %vm599, %v596, %v598
        %v601 = vsel %vm599, %v594, %v596
        %v602 = vsel %vm599, %v592, %v594
        %v603 = vsel %vm599, %v598, %v592
        %s604 = scalar_lea.vmem [#allocation5], 7
        %v605 = vld [vmem:[%s604] ss:$8 sm:$0xf]
        %v607 = vperm.slane %v605, 0
        %v608 = vperm.slane %v605, 1
        %v609 = vperm.slane %v605, 2
        %v610 = vperm.slane %v605, 3
        %v615 = vmul.f32 %v602, %v607
        %v616 = vmul.f32 %v601, %v608
        %v617 = vmul.f32 %v600, %v609
        %v618 = vmul.f32 %v603, %v610
        %619 = vrot.lane.b32.xlu0 %v403, 94
        %v620 = vpop.permute.xlu0 %619
        %621 = vrot.lane.b32.xlu0 %v404, 94
        %v622 = vpop.permute.xlu0 %621
        %623 = vrot.lane.b32.xlu0 %v405, 94
        %v624 = vpop.permute.xlu0 %623
        %625 = vrot.lane.b32.xlu0 %v406, 94
        %v626 = vpop.permute.xlu0 %625
        %vm627 = vcmp.lt.s32.totalorder %v416, 94
        %v628 = vsel %vm627, %v624, %v626
        %v629 = vsel %vm627, %v622, %v624
        %v630 = vsel %vm627, %v620, %v622
        %v631 = vsel %vm627, %v626, %v620
        %s632 = scalar_lea.vmem [#allocation5], 32
        %v633 = vld [vmem:[%s632] ss:$8 sm:$0xf]
        %v635 = vperm.slane %v633, 0
        %v636 = vperm.slane %v633, 1
        %v637 = vperm.slane %v633, 2
        %v638 = vperm.slane %v633, 3
        %v643 = vmul.f32 %v630, %v635
        %v644 = vmul.f32 %v629, %v636
        %v645 = vmul.f32 %v628, %v637
        %v646 = vmul.f32 %v631, %v638
        %v647 = vld [vmem:[%s2] sm:$0xff]
        %vm648 = vcmask 588800
        %v650 = vsel %vm648, %v647, 0
        %652 = vmatpush.msra.mxu0 0.0
        %653 = vmatpush.msra.mxu0 0.0
        %654 = vmatpush.msra.mxu0 0.0
        %655 = vmatpush.msra.mxu0 0.0
        %656 = vmatpush.msra.mxu0 0.0
        %657 = vmatpush.msra.mxu0 0.0
        %658 = vmatpush.msra.mxu0 0.0
        %659 = vmatpush.msra.mxu0 %v643
        %660 = vmatpush.msra.mxu0 %v615
        %661 = vmatpush.msra.mxu0 %v587
        %662 = vmatpush.msra.mxu0 %v559
        %663 = vmatpush.msra.mxu0 %v531
        %664 = vmatpush.msra.mxu0 %v516
        %665 = vmatpush.msra.mxu0 %v488
        %666 = vmatpush.msra.mxu0 %v460
        %667 = vmatpush.msra.mxu0 %v432
        %668 = vmatmul.f32.gmra.mxu0 %v650
        %v669 = vpop.f32.mrf.mxu0
        %v670 = vadd.f32 0.0, %v669
        %671 = vdwg.mxu0
        %672 = vmatpush.msra.mxu0 0.0
        %673 = vmatpush.msra.mxu0 0.0
        %674 = vmatpush.msra.mxu0 0.0
        %675 = vmatpush.msra.mxu0 0.0
        %676 = vmatpush.msra.mxu0 0.0
        %677 = vmatpush.msra.mxu0 0.0
        %678 = vmatpush.msra.mxu0 0.0
        %679 = vmatpush.msra.mxu0 %v644
        %680 = vmatpush.msra.mxu0 %v616
        %681 = vmatpush.msra.mxu0 %v588
        %682 = vmatpush.msra.mxu0 %v560
        %683 = vmatpush.msra.mxu0 %v532
        %684 = vmatpush.msra.mxu0 %v517
        %685 = vmatpush.msra.mxu0 %v489
        %686 = vmatpush.msra.mxu0 %v461
        %687 = vmatpush.msra.mxu0 %v433
        %688 = vmatmul.f32.gmra.mxu0 %v650
        %v689 = vpop.f32.mrf.mxu0
        %v690 = vadd.f32 0.0, %v689
        %691 = vdwg.mxu0
        %692 = vmatpush.msra.mxu0 0.0
        %693 = vmatpush.msra.mxu0 0.0
        %694 = vmatpush.msra.mxu0 0.0
        %695 = vmatpush.msra.mxu0 0.0
        %696 = vmatpush.msra.mxu0 0.0
        %697 = vmatpush.msra.mxu0 0.0
        %698 = vmatpush.msra.mxu0 0.0
        %699 = vmatpush.msra.mxu0 %v645
        %700 = vmatpush.msra.mxu0 %v617
        %701 = vmatpush.msra.mxu0 %v589
        %702 = vmatpush.msra.mxu0 %v561
        %703 = vmatpush.msra.mxu0 %v533
        %704 = vmatpush.msra.mxu0 %v518
        %705 = vmatpush.msra.mxu0 %v490
        %706 = vmatpush.msra.mxu0 %v462
        %707 = vmatpush.msra.mxu0 %v434
        %708 = vmatmul.f32.gmra.mxu0 %v650
        %v709 = vpop.f32.mrf.mxu0
        %v710 = vadd.f32 0.0, %v709
        %711 = vdwg.mxu0
        %712 = vmatpush.msra.mxu0 0.0
        %713 = vmatpush.msra.mxu0 0.0
        %714 = vmatpush.msra.mxu0 0.0
        %715 = vmatpush.msra.mxu0 0.0
        %716 = vmatpush.msra.mxu0 0.0
        %717 = vmatpush.msra.mxu0 0.0
        %718 = vmatpush.msra.mxu0 0.0
        %719 = vmatpush.msra.mxu0 %v646
        %720 = vmatpush.msra.mxu0 %v618
        %721 = vmatpush.msra.mxu0 %v590
        %722 = vmatpush.msra.mxu0 %v562
        %723 = vmatpush.msra.mxu0 %v534
        %724 = vmatpush.msra.mxu0 %v519
        %725 = vmatpush.msra.mxu0 %v491
        %726 = vmatpush.msra.mxu0 %v463
        %727 = vmatpush.msra.mxu0 %v435
        %728 = vmatmul.f32.gmra.mxu0 %v650
        %v729 = vpop.f32.mrf.mxu0
        %v730 = vadd.f32 0.0, %v729
        %731 = vdwg.mxu0
        %732 = vset.pattern.permute.xlu0 1
        %733 = vperm.xlu0 %732, %v299
        %v734 = vpop.permute.xlu0 %733
        %v736 = vmul.f32 %v670, %v734
        %v737 = vmul.f32 %v690, %v734
        %v738 = vmul.f32 %v710, %v734
        %v739 = vmul.f32 %v730, %v734
        %740 = vset.pattern.permute.xlu0 4
        %741 = vperm.xlu0 %740, %v299
        %v742 = vpop.permute.xlu0 %741
        %v744 = vadd.f32 %v736, %v742
        %v745 = vadd.f32 %v737, %v742
        %v746 = vadd.f32 %v738, %v742
        %v747 = vadd.f32 %v739, %v742
        %v748 = vmax.f32 %v744, 0.0
        %v749 = vmax.f32 %v745, 0.0
        %v750 = vmax.f32 %v746, 0.0
        %v751 = vmax.f32 %v747, 0.0
        %v752 = vld [vmem:[%s3] sm:$0xff]
        %v753 = vld [vmem:[%s3 + $0x8] sm:$0xff]
        %vm754 = vcmask 64512
        %v756 = vsel %vm754, %v752, 0
        %v759 = vsel %vm754, %v753, 0
        %761 = vmatpush.msra.mxu0 0.0
        %762 = vmatpush.msra.mxu0 0.0
        %763 = vmatpush.msra.mxu0 0.0
        %764 = vmatpush.msra.mxu0 0.0
        %765 = vmatpush.msra.mxu0 0.0
        %766 = vmatpush.msra.mxu0 0.0
        %767 = vmatpush.msra.mxu0 0.0
        %768 = vmatpush.msra.mxu0 0.0
        %769 = vmatpush.msra.mxu0 0.0
        %770 = vmatpush.msra.mxu0 0.0
        %771 = vmatpush.msra.mxu0 0.0
        %772 = vmatpush.msra.mxu0 0.0
        %773 = vmatpush.msra.mxu0 0.0
        %774 = vmatpush.msra.mxu0 0.0
        %775 = vmatpush.msra.mxu0 0.0
        %776 = vmatpush.msra.mxu0 %v748
        %777 = vmatmul.f32.gmra.mxu0 %v756
        %v778 = vpop.f32.mrf.mxu0
        %v779 = vadd.f32 0.0, %v778
        %780 = vmatmul.f32.gmra.mxu0 %v759
        %v781 = vpop.f32.mrf.mxu0
        %v782 = vadd.f32 0.0, %v781
        %783 = vdwg.mxu0
        %784 = vmatpush.msra.mxu0 0.0
        %785 = vmatpush.msra.mxu0 0.0
        %786 = vmatpush.msra.mxu0 0.0
        %787 = vmatpush.msra.mxu0 0.0
        %788 = vmatpush.msra.mxu0 0.0
        %789 = vmatpush.msra.mxu0 0.0
        %790 = vmatpush.msra.mxu0 0.0
        %791 = vmatpush.msra.mxu0 0.0
        %792 = vmatpush.msra.mxu0 0.0
        %793 = vmatpush.msra.mxu0 0.0
        %794 = vmatpush.msra.mxu0 0.0
        %795 = vmatpush.msra.mxu0 0.0
        %796 = vmatpush.msra.mxu0 0.0
        %797 = vmatpush.msra.mxu0 0.0
        %798 = vmatpush.msra.mxu0 0.0
        %799 = vmatpush.msra.mxu0 %v749
        %800 = vmatmul.f32.gmra.mxu0 %v756
        %v801 = vpop.f32.mrf.mxu0
        %v802 = vadd.f32 0.0, %v801
        %803 = vmatmul.f32.gmra.mxu0 %v759
        %v804 = vpop.f32.mrf.mxu0
        %v805 = vadd.f32 0.0, %v804
        %806 = vdwg.mxu0
        %807 = vmatpush.msra.mxu0 0.0
        %808 = vmatpush.msra.mxu0 0.0
        %809 = vmatpush.msra.mxu0 0.0
        %810 = vmatpush.msra.mxu0 0.0
        %811 = vmatpush.msra.mxu0 0.0
        %812 = vmatpush.msra.mxu0 0.0
        %813 = vmatpush.msra.mxu0 0.0
        %814 = vmatpush.msra.mxu0 0.0
        %815 = vmatpush.msra.mxu0 0.0
        %816 = vmatpush.msra.mxu0 0.0
        %817 = vmatpush.msra.mxu0 0.0
        %818 = vmatpush.msra.mxu0 0.0
        %819 = vmatpush.msra.mxu0 0.0
        %820 = vmatpush.msra.mxu0 0.0
        %821 = vmatpush.msra.mxu0 0.0
        %822 = vmatpush.msra.mxu0 %v750
        %823 = vmatmul.f32.gmra.mxu0 %v756
        %v824 = vpop.f32.mrf.mxu0
        %v825 = vadd.f32 0.0, %v824
        %826 = vmatmul.f32.gmra.mxu0 %v759
        %v827 = vpop.f32.mrf.mxu0
        %v828 = vadd.f32 0.0, %v827
        %829 = vdwg.mxu0
        %830 = vmatpush.msra.mxu0 0.0
        %831 = vmatpush.msra.mxu0 0.0
        %832 = vmatpush.msra.mxu0 0.0
        %833 = vmatpush.msra.mxu0 0.0
        %834 = vmatpush.msra.mxu0 0.0
        %835 = vmatpush.msra.mxu0 0.0
        %836 = vmatpush.msra.mxu0 0.0
        %837 = vmatpush.msra.mxu0 0.0
        %838 = vmatpush.msra.mxu0 0.0
        %839 = vmatpush.msra.mxu0 0.0
        %840 = vmatpush.msra.mxu0 0.0
        %841 = vmatpush.msra.mxu0 0.0
        %842 = vmatpush.msra.mxu0 0.0
        %843 = vmatpush.msra.mxu0 0.0
        %844 = vmatpush.msra.mxu0 0.0
        %845 = vmatpush.msra.mxu0 %v751
        %846 = vmatmul.f32.gmra.mxu0 %v756
        %v847 = vpop.f32.mrf.mxu0
        %v848 = vadd.f32 0.0, %v847
        %849 = vmatmul.f32.gmra.mxu0 %v759
        %v850 = vpop.f32.mrf.mxu0
        %v851 = vadd.f32 0.0, %v850
        %852 = vdwg.mxu0
        %853 = vset.pattern.permute.xlu0 2
        %854 = vperm.xlu0 %853, %v299
        %v855 = vpop.permute.xlu0 %854
        %858 = vset.pattern.permute.xlu0 2
        %859 = vperm.xlu0 %858, %v300
        %v860 = vpop.permute.xlu0 %859
        %v862 = vmul.f32 %v779, %v855
        %v863 = vmul.f32 %v802, %v855
        %v864 = vmul.f32 %v825, %v855
        %v865 = vmul.f32 %v848, %v855
        %v866 = vmul.f32 %v782, %v860
        %v867 = vmul.f32 %v805, %v860
        %v868 = vmul.f32 %v828, %v860
        %v869 = vmul.f32 %v851, %v860
        %870 = vset.pattern.permute.xlu0 5
        %871 = vperm.xlu0 %870, %v299
        %v872 = vpop.permute.xlu0 %871
        %874 = vset.pattern.permute.xlu0 5
        %875 = vperm.xlu0 %874, %v300
        %v876 = vpop.permute.xlu0 %875
        %v878 = vadd.f32 %v862, %v872
        %v879 = vadd.f32 %v863, %v872
        %v880 = vadd.f32 %v864, %v872
        %v881 = vadd.f32 %v865, %v872
        %v882 = vadd.f32 %v866, %v876
        %v883 = vadd.f32 %v867, %v876
        %v884 = vadd.f32 %v868, %v876
        %v885 = vadd.f32 %v869, %v876
        %v886 = vadd.f32 %v878, %v291
        %v887 = vadd.f32 %v879, %v292
        %v888 = vadd.f32 %v880, %v293
        %v889 = vadd.f32 %v881, %v294
        %v890 = vadd.f32 %v882, %v295
        %v891 = vadd.f32 %v883, %v296
        %v892 = vadd.f32 %v884, %v297
        %v893 = vadd.f32 %v885, %v298
        %v894 = vmax.f32 %v886, 0.0
        %v895 = vmax.f32 %v887, 0.0
        %v896 = vmax.f32 %v888, 0.0
        %v897 = vmax.f32 %v889, 0.0
        %v898 = vmax.f32 %v890, 0.0
        %v899 = vmax.f32 %v891, 0.0
        %v900 = vmax.f32 %v892, 0.0
        %v901 = vmax.f32 %v893, 0.0
        %902 = vst [vmem:[%s288] sm:$0xff] %v894
        %903 = vst [vmem:[%s288 + $0x8] sm:$0xff] %v895
        %904 = vst [vmem:[%s288 + $0x10] sm:$0xff] %v896
        %905 = vst [vmem:[%s288 + $0x18] sm:$0xff] %v897
        %906 = vst [vmem:[%s288 + $0x20] sm:$0xff] %v898
        %907 = vst [vmem:[%s288 + $0x28] sm:$0xff] %v899
        %908 = vst [vmem:[%s288 + $0x30] sm:$0xff] %v900
        %909 = vst [vmem:[%s288 + $0x38] sm:$0xff] %v901
        %s910 = sand.u32 %s163, 1
        %s911 = scalar_lea.sflag [#allocation4], %s910
        %s912 = sand.u32 %s163, 1
        %s913 = smul.addr %s912, 64
        %s914 = scalar_lea.vmem [#allocation7], %s913
        // Predicated region
        $region53: #{tpu_custom_call.1} parent=43 // pred_check
          %p915 = pneg %p173
        $region54: #{tpu_custom_call.1} parent=43 // pred_check_branch
          %917 = sbr.rel (%p915) target = $region56
        $region55: #{tpu_custom_call.1} parent=43 // pred_region
          %s918 = smul.u32 4, %s24
          %920 = vsyncadd %s911, 0
          %s921 = smul.addr %s918, 8
          %s922 = scalar_lea.hbm %s6, %s921
          %s923 = sshll.u32 %s914, 4
          %s924 = int_to_ptr.vmem [resolvable:$true] %s923
          %s925 = sshll.u32 %s922, 4
          %s926 = int_to_ptr.hbm [resolvable:$true] %s925
          %931 = dma.vmem_to_hbm [thread:$0]  %s924, 1024, %s926, %s911, 512, 1024, 32
        $region56: #{tpu_custom_call.1} parent=43 // pred_fallthru
          _
      $region44: #{tpu_custom_call.1} parent=5 // pred_fallthru
        _
      %p932 = scmp.le.s32.totalorder 2, %s19
      // Predicated region
      $region57: #{tpu_custom_call.1} parent=5 // pred_check
        %p933 = pneg %p932
      $region58: #{tpu_custom_call.1} parent=5 // pred_check_branch
        %935 = sbr.rel (%p933) target = $region60
      $region59: #{tpu_custom_call.1} parent=5 // pred_region
        %s936 = ssub.s32 %s19, 2
        // Predicated region
        $region61: #{tpu_custom_call.1} parent=59 // pred_check
          %p937 = pneg %p179
        $region62: #{tpu_custom_call.1} parent=59 // pred_check_branch
          %939 = sbr.rel (%p937) target = $region64
        $region63: #{tpu_custom_call.1} parent=59 // pred_region
          %s940 = sand.u32 %s164, 1
          %s941 = scalar_lea.sflag [#allocation4], %s940
          %s942 = sand.u32 %s164, 1
          %s943 = smul.addr %s942, 64
          %s944 = scalar_lea.vmem [#allocation7], %s943
          %946 = dma.done %s941, 1024
        $region64: #{tpu_custom_call.1} parent=59 // pred_fallthru
          _
      $region60: #{tpu_custom_call.1} parent=5 // pred_fallthru
        _
    $region6: #{tpu_custom_call.1} parent=1 // loop_footer
      %s23 = sadd.s32 1, %s19
    $region7: #{tpu_custom_call.1} parent=1 // loop_footer_branch
      %18 = sbr.rel target = $region3
    $region8: #{tpu_custom_call.1} parent=1 // loop_exit
      _
    %947 = vsyncpa [#allocation3], 1
    %s948 = scalar_lea.sflag [#allocation3], 1
    %949 = vsyncpa %s948, 1
    %950 = vsyncpa [#allocation6], 1
    %951 = vsyncpa [#allocation4], 1
    %s952 = scalar_lea.sflag [#allocation4], 1
    %953 = vsyncpa %s952, 1

</llo_original>
